<compile_context>
chip_gen: v7x
topology: tpu7x:2x2x1
jax: 0.10.0
libtpu: 0.0.40
codegen_flags: <defaults>
</compile_context>

<pallas_src>
import functools
import numpy as np
import jax
import jax.numpy as jnp
from jax import lax
from jax.experimental import pallas as pl
from jax.experimental.pallas import tpu as pltpu

_BN_EPS = 1e-5
_INV_SQRT2 = 0.7071067811865476
_VMEM_LIMIT = 64 * 1024 * 1024  # > scoped defaults (16/32 MiB), <= physical on v5e/v6e/v7x


def _round_up(a, b):
    return (a + b - 1) // b * b


def _gelu_exact(x):
    # PyTorch nn.GELU() default: 0.5 * x * (1 + erf(x / sqrt(2)))
    return 0.5 * x * (1.0 + lax.erf(x * _INV_SQRT2))


# ---------------------------------------------------------------------------
# Kernel 1: per-feature batch statistics.
# Accumulates shifted partial sums on (8, D_in) scratch (VPU-only adds in the
# hot loop); one cross-sublane reduce + finalize to mean / biased variance on
# the last grid step. Rows >= n_rows (zero padding) are masked out.
# ---------------------------------------------------------------------------
def _bn_stats_kernel(x_ref, mean_ref, var_ref, shift_scr, s1_scr, s2_scr,
                     *, n_rows, row_tile):
    i = pl.program_id(0)
    xt = x_ref[...].astype(jnp.float32)

    @pl.when(i == 0)
    def _():
        # Per-feature shift for numerically stable one-pass variance
        # (Var(x) == Var(x - c) for any constant c).
        shift_scr[...] = jnp.mean(xt, axis=0, keepdims=True)
        s1_scr[...] = jnp.zeros_like(s1_scr)
        s2_scr[...] = jnp.zeros_like(s2_scr)

    # Mask rows beyond the true row count (wrapper zero-pads to a tile multiple).
    row_ids = lax.broadcasted_iota(jnp.int32, xt.shape, 0)
    valid = row_ids < (n_rows - i * row_tile)
    xc = jnp.where(valid, xt - shift_scr[...], 0.0)

    # Fold row_tile rows onto 8 sublanes: vreg-wise elementwise adds (VPU),
    # no per-step cross-sublane reduction.
    xc3 = xc.reshape(row_tile // 8, 8, -1)
    s1_scr[...] += jnp.sum(xc3, axis=0)
    s2_scr[...] += jnp.sum(xc3 * xc3, axis=0)

    @pl.when(i == pl.num_programs(0) - 1)
    def _():
        inv_n = 1.0 / n_rows
        d1 = jnp.sum(s1_scr[...], axis=0, keepdims=True) * inv_n
        d2 = jnp.sum(s2_scr[...], axis=0, keepdims=True) * inv_n
        mean_ref[...] = shift_scr[...] + d1
        var_ref[...] = d2 - d1 * d1  # biased variance (training-mode BN)


# ---------------------------------------------------------------------------
# Kernel 2: per row-tile -> [Linear, GELU] * L  (BN already folded into W0/b0)
# ---------------------------------------------------------------------------
def _mlp_kernel(x_ref, *refs, num_layers):
    out_ref = refs[-1]
    wb = refs[:-1]

    h = x_ref[...].astype(jnp.float32)
    for li in range(num_layers):
        w = wb[2 * li][...]
        b = wb[2 * li + 1][...]
        h = jnp.dot(h, w, preferred_element_type=jnp.float32) + b
        h = _gelu_exact(h)

    out_ref[...] = h.astype(out_ref.dtype)


# ---------------------------------------------------------------------------
# Wrapper
# ---------------------------------------------------------------------------
def embedding_old_forward(x, bn_gamma, bn_beta, weights, biases,
                          *, normalize_input=True, row_tile=256):
    B, S, D_in = x.shape
    N = B * S
    D_out = weights[-1].shape[1]

    # Tiling: big row tiles (default 256: multiple of 256 for v6e/v7x MXU M-dim,
    # multiple of 128 for v5e, multiple of 8 sublanes). Pad rows to a tile
    # multiple so arbitrary (B, S) works.
    row_tile = max(8, min(int(row_tile), _round_up(N, 8)))
    row_tile = _round_up(row_tile, 8)
    N_pad = _round_up(N, row_tile)
    grid = (N_pad // row_tile,)

    x2 = x.reshape(N, D_in)
    if N_pad != N:
        x2 = jnp.pad(x2, ((0, N_pad - N), (0, 0)))

    weights = [w.astype(jnp.float32) for w in weights]
    biases = [b.reshape(1, -1).astype(jnp.float32) for b in biases]

    if normalize_input:
        mean, var = pl.pallas_call(
            functools.partial(_bn_stats_kernel, n_rows=N, row_tile=row_tile),
            out_shape=(jax.ShapeDtypeStruct((1, D_in), jnp.float32),
                       jax.ShapeDtypeStruct((1, D_in), jnp.float32)),
            grid=grid,
            in_specs=[pl.BlockSpec((row_tile, D_in), lambda i: (i, 0))],
            out_specs=(pl.BlockSpec((1, D_in), lambda i: (0, 0)),
                       pl.BlockSpec((1, D_in), lambda i: (0, 0))),
            scratch_shapes=[pltpu.VMEM((1, D_in), jnp.float32),   # shift
                            pltpu.VMEM((8, D_in), jnp.float32),   # sum partials
                            pltpu.VMEM((8, D_in), jnp.float32)],  # sumsq partials
            compiler_params=pltpu.CompilerParams(
                dimension_semantics=("arbitrary",),
                vmem_limit_bytes=_VMEM_LIMIT),
        )(x2)

        # Fold BN affine into the first Linear (tiny one-time XLA op):
        #   y = x*s + t, with s = gamma/sqrt(var+eps), t = beta - mean*s
        #   y @ W0 + b0 = x @ (s[:,None]*W0) + (t @ W0 + b0)
        scale = bn_gamma.reshape(1, D_in).astype(jnp.float32) * lax.rsqrt(var + _BN_EPS)
        shift = bn_beta.reshape(1, D_in).astype(jnp.float32) - mean * scale
        w0 = weights[0] * scale.reshape(D_in, 1)
        b0 = biases[0] + shift @ weights[0]
        weights = [w0] + weights[1:]
        biases = [b0] + biases[1:]

    wb_inputs, wb_specs = [], []
    for w, b in zip(weights, biases):
        wb_inputs += [w, b]
        # NOTE: constant-index operands; on v7x (64 MiB VMEM) these could be
        # single-buffered via pipeline_mode=pl.Buffered(1) to halve their
        # VMEM footprint.
        wb_specs += [pl.BlockSpec(w.shape, lambda i: (0, 0)),
                     pl.BlockSpec(b.shape, lambda i: (0, 0))]

    out = pl.pallas_call(
        functools.partial(_mlp_kernel, num_layers=len(weights)),
        out_shape=jax.ShapeDtypeStruct((N_pad, D_out), x.dtype),
        grid=grid,
        in_specs=[pl.BlockSpec((row_tile, D_in), lambda i: (i, 0))] + wb_specs,
        out_specs=pl.BlockSpec((row_tile, D_out), lambda i: (i, 0)),
        compiler_params=pltpu.CompilerParams(
            dimension_semantics=("parallel",),
            vmem_limit_bytes=_VMEM_LIMIT),
    )(x2, *wb_inputs)

    return out[:N].reshape(B, S, D_out)


# ---------------------------------------------------------------------------
# Pure-JAX reference (mirrors the PyTorch forward semantics)
# ---------------------------------------------------------------------------
def reference(x, bn_gamma, bn_beta, weights, biases, normalize_input=True):
    B, S, D = x.shape
    h = x.reshape(B * S, D).astype(jnp.float32)
    if normalize_input:
        m = jnp.mean(h, axis=0, keepdims=True)
        v = jnp.var(h, axis=0, keepdims=True)  # biased, like training-mode BN
        h = (h - m) / jnp.sqrt(v + _BN_EPS)
        h = h * bn_gamma.reshape(1, -1) + bn_beta.reshape(1, -1)
    for w, b in zip(weights, biases):
        h = h @ w + b.reshape(1, -1)
        h = _gelu_exact(h)
    return h.reshape(B, S, -1)


if __name__ == "__main__":
    # Small but non-trivial: N = B*S = 384 rows -> 2 grid steps of 256 rows
    # (last tile partially padded), exercising accumulation + masking.
    B, S, D_in = 4, 96, 32
    embed_dims = (64, 32)

    key = jax.random.PRNGKey(0)
    keys = jax.random.split(key, 3 + 2 * len(embed_dims))
    x = jax.random.normal(keys[0], (B, S, D_in), jnp.float32)

    # BatchNorm1d learnable params (randomized to exercise the affine fold)
    bn_gamma = jax.random.uniform(keys[1], (D_in,), jnp.float32, 0.5, 1.5)
    bn_beta = 0.1 * jax.random.normal(keys[2], (D_in,), jnp.float32)

    # Linear params (stored as (in, out), i.e. transposed PyTorch weight)
    weights, biases = [], []
    d_prev = D_in
    for li, d in enumerate(embed_dims):
        bound = 1.0 / np.sqrt(d_prev)
        weights.append(jax.random.uniform(keys[3 + 2 * li], (d_prev, d),
                                          jnp.float32, -bound, bound))
        biases.append(jax.random.uniform(keys[4 + 2 * li], (d,),
                                         jnp.float32, -bound, bound))
        d_prev = d

    out = embedding_old_forward(x, bn_gamma, bn_beta, weights, biases,
                                normalize_input=True, row_tile=256)
    out = jax.block_until_ready(out)

    ref = reference(x, bn_gamma, bn_beta, weights, biases, normalize_input=True)
    np.testing.assert_allclose(np.asarray(out), np.asarray(ref),
                               rtol=2e-5, atol=2e-5)
    print("KERNEL_OK")
</pallas_src>

<mosaic_0001>
module attributes {stable_mosaic.version = 11 : i64} {
  func.func @_bn_stats_kernel(%arg0: i32, %arg1: memref<256x32xf32, #tpu.memory_space<vmem>>, %arg2: memref<1x32xf32, #tpu.memory_space<vmem>>, %arg3: memref<1x32xf32, #tpu.memory_space<vmem>>, %arg4: memref<1x32xf32, #tpu.memory_space<vmem>>, %arg5: memref<8x32xf32, #tpu.memory_space<vmem>>, %arg6: memref<8x32xf32, #tpu.memory_space<vmem>>) attributes {dimension_semantics = [#tpu.dimension_semantics<arbitrary>], iteration_bounds = array<i64: 2>, scalar_prefetch = 0 : i64, scratch_operands = 3 : i64, tpu.core_type = #tpu.core_type<tc>, window_params = [{transform_indices = @transform_0, window_bounds = array<i64: 256, 32>}, {pipeline_mode = #tpu.pipeline_mode<synchronous>, transform_indices = @transform_1, window_bounds = array<i64: 1, 32>}, {pipeline_mode = #tpu.pipeline_mode<synchronous>, transform_indices = @transform_2, window_bounds = array<i64: 1, 32>}]} {
    %c0 = arith.constant 0 : index
    %c0_0 = arith.constant 0 : index
    %0 = vector.load %arg1[%c0, %c0_0] : memref<256x32xf32, #tpu.memory_space<vmem>>, vector<256x32xf32>
    %c0_i32 = arith.constant 0 : i32
    %1 = arith.cmpi eq, %arg0, %c0_i32 : i32
    %2 = arith.extui %1 : i1 to i32
    %c0_i32_1 = arith.constant 0 : i32
    %3 = arith.cmpi ne, %2, %c0_i32_1 : i32
    scf.if %3 {
      %cst_15 = arith.constant dense<0.000000e+00> : vector<32xf32>
      %27 = vector.multi_reduction <add>, %0, %cst_15 [0] : vector<256x32xf32> to vector<32xf32>
      %28 = vector.shape_cast %27 : vector<32xf32> to vector<1x32xf32>
      %cst_16 = arith.constant 2.560000e+02 : f32
      %29 = vector.broadcast %cst_16 : f32 to vector<1x32xf32>
      %30 = arith.divf %28, %29 : vector<1x32xf32>
      %c0_17 = arith.constant 0 : index
      %c0_18 = arith.constant 0 : index
      %31 = vector.load %arg4[%c0_17, %c0_18] : memref<1x32xf32, #tpu.memory_space<vmem>>, vector<1x32xf32>
      tpu.vector_store %arg4[%c0_17, %c0_18], %30 {strides = array<i32>} : memref<1x32xf32, #tpu.memory_space<vmem>>, vector<1x32xf32>,
      %cst_19 = arith.constant 0.000000e+00 : f32
      %32 = vector.broadcast %cst_19 : f32 to vector<8x32xf32>
      %c0_20 = arith.constant 0 : index
      %c0_21 = arith.constant 0 : index
      %33 = vector.load %arg5[%c0_20, %c0_21] : memref<8x32xf32, #tpu.memory_space<vmem>>, vector<8x32xf32>
      tpu.vector_store %arg5[%c0_20, %c0_21], %32 {strides = array<i32>} : memref<8x32xf32, #tpu.memory_space<vmem>>, vector<8x32xf32>,
      %cst_22 = arith.constant 0.000000e+00 : f32
      %34 = vector.broadcast %cst_22 : f32 to vector<8x32xf32>
      %c0_23 = arith.constant 0 : index
      %c0_24 = arith.constant 0 : index
      %35 = vector.load %arg6[%c0_23, %c0_24] : memref<8x32xf32, #tpu.memory_space<vmem>>, vector<8x32xf32>
      tpu.vector_store %arg6[%c0_23, %c0_24], %34 {strides = array<i32>} : memref<8x32xf32, #tpu.memory_space<vmem>>, vector<8x32xf32>,
    } else {
    }
    %4 = tpu.iota {dimensions = array<i32: 0>} : vector<256x32xi32>
    %c256_i32 = arith.constant 256 : i32
    %5 = arith.muli %arg0, %c256_i32 : i32
    %c384_i32 = arith.constant 384 : i32
    %6 = arith.subi %c384_i32, %5 : i32
    %7 = vector.broadcast %6 : i32 to vector<256x32xi32>
    %8 = arith.cmpi slt, %4, %7 : vector<256x32xi32>
    %c0_2 = arith.constant 0 : index
    %c0_3 = arith.constant 0 : index
    %9 = vector.load %arg4[%c0_2, %c0_3] : memref<1x32xf32, #tpu.memory_space<vmem>>, vector<1x32xf32>
    %10 = vector.broadcast %9 : vector<1x32xf32> to vector<256x32xf32>
    %11 = arith.subf %0, %10 : vector<256x32xf32>
    %cst = arith.constant 0.000000e+00 : f32
    %12 = vector.broadcast %cst : f32 to vector<256x32xf32>
    %13 = arith.select %8, %11, %12 : vector<256x32xi1>, vector<256x32xf32>
    %14 = vector.shape_cast %13 : vector<256x32xf32> to vector<32x8x32xf32>
    %c0_4 = arith.constant 0 : index
    %c0_5 = arith.constant 0 : index
    %15 = vector.load %arg5[%c0_4, %c0_5] : memref<8x32xf32, #tpu.memory_space<vmem>>, vector<8x32xf32>
    %cst_6 = arith.constant dense<0.000000e+00> : vector<8x32xf32>
    %16 = vector.multi_reduction <add>, %14, %cst_6 [0] : vector<32x8x32xf32> to vector<8x32xf32>
    %17 = arith.addf %15, %16 : vector<8x32xf32>
    %c0_7 = arith.constant 0 : index
    %c0_8 = arith.constant 0 : index
    %18 = vector.load %arg5[%c0_7, %c0_8] : memref<8x32xf32, #tpu.memory_space<vmem>>, vector<8x32xf32>
    tpu.vector_store %arg5[%c0_7, %c0_8], %17 {strides = array<i32>} : memref<8x32xf32, #tpu.memory_space<vmem>>, vector<8x32xf32>,
    %c0_9 = arith.constant 0 : index
    %c0_10 = arith.constant 0 : index
    %19 = vector.load %arg6[%c0_9, %c0_10] : memref<8x32xf32, #tpu.memory_space<vmem>>, vector<8x32xf32>
    %20 = arith.mulf %14, %14 : vector<32x8x32xf32>
    %cst_11 = arith.constant dense<0.000000e+00> : vector<8x32xf32>
    %21 = vector.multi_reduction <add>, %20, %cst_11 [0] : vector<32x8x32xf32> to vector<8x32xf32>
    %22 = arith.addf %19, %21 : vector<8x32xf32>
    %c0_12 = arith.constant 0 : index
    %c0_13 = arith.constant 0 : index
    %23 = vector.load %arg6[%c0_12, %c0_13] : memref<8x32xf32, #tpu.memory_space<vmem>>, vector<8x32xf32>
    tpu.vector_store %arg6[%c0_12, %c0_13], %22 {strides = array<i32>} : memref<8x32xf32, #tpu.memory_space<vmem>>, vector<8x32xf32>,
    %c1_i32 = arith.constant 1 : i32
    %24 = arith.cmpi eq, %arg0, %c1_i32 : i32
    %25 = arith.extui %24 : i1 to i32
    %c0_i32_14 = arith.constant 0 : i32
    %26 = arith.cmpi ne, %25, %c0_i32_14 : i32
    scf.if %26 {
      %c0_15 = arith.constant 0 : index
      %c0_16 = arith.constant 0 : index
      %27 = vector.load %arg5[%c0_15, %c0_16] : memref<8x32xf32, #tpu.memory_space<vmem>>, vector<8x32xf32>
      %cst_17 = arith.constant dense<0.000000e+00> : vector<32xf32>
      %28 = vector.multi_reduction <add>, %27, %cst_17 [0] : vector<8x32xf32> to vector<32xf32>
      %29 = vector.shape_cast %28 : vector<32xf32> to vector<1x32xf32>
      %cst_18 = arith.constant 0.00260416674 : f32
      %30 = vector.broadcast %cst_18 : f32 to vector<1x32xf32>
      %31 = arith.mulf %29, %30 : vector<1x32xf32>
      %c0_19 = arith.constant 0 : index
      %c0_20 = arith.constant 0 : index
      %32 = vector.load %arg6[%c0_19, %c0_20] : memref<8x32xf32, #tpu.memory_space<vmem>>, vector<8x32xf32>
      %cst_21 = arith.constant dense<0.000000e+00> : vector<32xf32>
      %33 = vector.multi_reduction <add>, %32, %cst_21 [0] : vector<8x32xf32> to vector<32xf32>
      %34 = vector.shape_cast %33 : vector<32xf32> to vector<1x32xf32>
      %cst_22 = arith.constant 0.00260416674 : f32
      %35 = vector.broadcast %cst_22 : f32 to vector<1x32xf32>
      %36 = arith.mulf %34, %35 : vector<1x32xf32>
      %c0_23 = arith.constant 0 : index
      %c0_24 = arith.constant 0 : index
      %37 = vector.load %arg4[%c0_23, %c0_24] : memref<1x32xf32, #tpu.memory_space<vmem>>, vector<1x32xf32>
      %38 = arith.addf %37, %31 : vector<1x32xf32>
      %c0_25 = arith.constant 0 : index
      %c0_26 = arith.constant 0 : index
      %39 = vector.load %arg2[%c0_25, %c0_26] : memref<1x32xf32, #tpu.memory_space<vmem>>, vector<1x32xf32>
      tpu.vector_store %arg2[%c0_25, %c0_26], %38 {strides = array<i32>} : memref<1x32xf32, #tpu.memory_space<vmem>>, vector<1x32xf32>,
      %40 = arith.mulf %31, %31 : vector<1x32xf32>
      %41 = arith.subf %36, %40 : vector<1x32xf32>
      %c0_27 = arith.constant 0 : index
      %c0_28 = arith.constant 0 : index
      %42 = vector.load %arg3[%c0_27, %c0_28] : memref<1x32xf32, #tpu.memory_space<vmem>>, vector<1x32xf32>
      tpu.vector_store %arg3[%c0_27, %c0_28], %41 {strides = array<i32>} : memref<1x32xf32, #tpu.memory_space<vmem>>, vector<1x32xf32>,
    } else {
    }
    return
  }
  func.func @transform_0(%arg0: i32) -> (i32, i32) {
    %c0_i32 = arith.constant 0 : i32
    %c0_i32_0 = arith.constant 0 : i32
    return %arg0, %c0_i32 : i32, i32
  }
  func.func @transform_1(%arg0: i32) -> (i32, i32) {
    %c0_i32 = arith.constant 0 : i32
    %c0_i32_0 = arith.constant 0 : i32
    %c0_i32_1 = arith.constant 0 : i32
    return %c0_i32, %c0_i32_0 : i32, i32
  }
  func.func @transform_2(%arg0: i32) -> (i32, i32) {
    %c0_i32 = arith.constant 0 : i32
    %c0_i32_0 = arith.constant 0 : i32
    %c0_i32_1 = arith.constant 0 : i32
    return %c0_i32, %c0_i32_0 : i32, i32
  }
}

</mosaic_0001>

<llo_original>
// kernel: tpu_custom_call.1
$region0: #{tpu_custom_call.1}
  #allocation0 [shape = 'u32[]', space=smem, size = 0x4, offset = 0x4, fixed_abs, tag = 'smem constant byte address 0x4 - core index']
  #allocation1 [shape = 'u32[144,128]{1,0:T(1,128)}', space=vmem, size = 0x12000, scoped, tag = 'internal scratch']
  #allocation2 [shape = 'f32[1,32]{1,0:T(1,128)}', space=vmem, size = 0x200, scoped, tag = 'scratch operand']
  #allocation3 [shape = 'f32[8,32]{1,0:T(8,128)}', space=vmem, size = 0x1000, scoped, tag = 'scratch operand']
  #allocation4 [shape = 'f32[8,32]{1,0:T(8,128)}', space=vmem, size = 0x1000, scoped, tag = 'scratch operand']
  %s0 = inlined_call_operand.hbm [shape: f32[512,32], index: 0, kind: input, shape index: {}]
  %s1 = inlined_call_operand.hbm [shape: f32[1,32], index: 1, kind: output, shape index: {0}]
  %s2 = inlined_call_operand.hbm [shape: f32[1,32], index: 2, kind: output, shape index: {1}]
  %3 = xla_tuple %s1, %s2
  %s4 = sld [smem:[#allocation0]]
  $region57: #{tpu_custom_call.1} parent=0
    _
  %s6 = ssub.s32 1, %s4
  %s7 = scalar_select 0, %s6, %s4
  $region1: #{tpu_custom_call.1} parent=0
    #allocation5 [shape = 'u8[262144]{0}', space=vmem, size = 0x40000, scoped, tag = 'input window, operand 0']
    #allocation6 [shape = 's32[2]{0}', space=sflag, size = 0x8, scoped, tag = 'scoped memory for tpu_custom_call.1']
    #allocation7 [shape = 's32[2]{0}', space=sflag, size = 0x8, scoped, tag = 'scoped memory for tpu_custom_call.1']
    #allocation8 [shape = 'u8[512]{0}', space=vmem, size = 0x400, scoped, tag = 'output window, operand 0, single buffered']
    #allocation9 [shape = 'u8[512]{0}', space=vmem, size = 0x400, scoped, tag = 'output window, operand 1, single buffered']
    #allocation10 [shape = 's32[1]{0}', space=sflag, size = 0x4, scoped, tag = 'scoped memory for tpu_custom_call.1']
    %8 = vsyncpa [#allocation6], 0
    %s9 = scalar_lea.sflag [#allocation6], 1
    %10 = vsyncpa %s9, 0
    %11 = vsyncpa [#allocation7], 0
    %12 = vsyncpa [#allocation10], 0
    loop: start=0, step=1, limit=4
    $region2: #{tpu_custom_call.1} parent=1 // loop_pre_header
      _
    $region3: #{tpu_custom_call.1} parent=1 // loop_header
      %s14 = sphi 0, %s18
      %p15 = scmp.ge.s32.totalorder %s14, 4
      %s24 = sphi 0, %s26
      %s27 = sphi 0, %s24
      %s28 = sphi 0, %s27
      %s44 = sphi 0, %s28
      %s48 = sphi 0, %s48
      %s50 = sphi 0, %s48
      %s51 = sphi 0, %s50
      %s65 = sphi 0, %s51
      %s69 = sphi 0, %s69
      %s71 = sphi 0, %s69
      %s72 = sphi 0, %s71
      %s86 = sphi 0, %s72
    $region4: #{tpu_custom_call.1} parent=1 // loop_header_branch
      %17 = sbr.rel (%p15) target = $region8
    $region5: #{tpu_custom_call.1} parent=1 // loop_body
      %s19 = ssub.s32 %s14, 1
      %s20 = ssub.s32 %s14, 2
      %s21 = sadd.s32 %s14, 1
      %s22 = ssub.s32 %s14, %s21
      %p23 = scmp.eq.s32.totalorder %s22, 0
      %s25 = sadd.s32 %s24, 1
      %s26 = scalar_select %p23, %s24, %s25
      %p29 = pneg %p23
      %p30 = scmp.eq.s32.totalorder %s14, 1
      %p31 = por %p29, %p30
      %p32 = scmp.ne.s32.totalorder %s24, %s27
      %p33 = scmp.eq.s32.totalorder %s14, 0
      %p34 = por %p32, %p33
      %p35 = scmp.ne.s32.totalorder %s24, %s27
      %p36 = scmp.eq.s32.totalorder %s19, 1
      %p37 = por %p35, %p36
      %p38 = scmp.ne.s32.totalorder %s27, %s28
      %p39 = scmp.eq.s32.totalorder %s19, 0
      %p40 = por %p38, %p39
      %p41 = scmp.ne.s32.totalorder %s27, %s28
      %p42 = scmp.eq.s32.totalorder %s20, 1
      %p43 = por %p41, %p42
      %p45 = scmp.ne.s32.totalorder %s28, %s44
      %p46 = scmp.eq.s32.totalorder %s20, 0
      %p47 = por %p45, %p46
      %s49 = sadd.s32 %s48, 1
      %p52 = scmp.eq.s32.totalorder %s14, 1
      %p53 = scmp.ne.s32.totalorder %s48, %s50
      %p54 = scmp.eq.s32.totalorder %s14, 0
      %p55 = por %p53, %p54
      %p56 = scmp.ne.s32.totalorder %s48, %s50
      %p57 = scmp.eq.s32.totalorder %s19, 1
      %p58 = por %p56, %p57
      %p59 = scmp.ne.s32.totalorder %s50, %s51
      %p60 = scmp.eq.s32.totalorder %s19, 0
      %p61 = por %p59, %p60
      %p62 = scmp.ne.s32.totalorder %s50, %s51
      %p63 = scmp.eq.s32.totalorder %s20, 1
      %p64 = por %p62, %p63
      %p66 = scmp.ne.s32.totalorder %s51, %s65
      %p67 = scmp.eq.s32.totalorder %s20, 0
      %p68 = por %p66, %p67
      %s70 = sadd.s32 %s69, 1
      %p73 = scmp.eq.s32.totalorder %s14, 1
      %p74 = scmp.ne.s32.totalorder %s69, %s71
      %p75 = scmp.eq.s32.totalorder %s14, 0
      %p76 = por %p74, %p75
      %p77 = scmp.ne.s32.totalorder %s69, %s71
      %p78 = scmp.eq.s32.totalorder %s19, 1
      %p79 = por %p77, %p78
      %p80 = scmp.ne.s32.totalorder %s71, %s72
      %p81 = scmp.eq.s32.totalorder %s19, 0
      %p82 = por %p80, %p81
      %p83 = scmp.ne.s32.totalorder %s71, %s72
      %p84 = scmp.eq.s32.totalorder %s20, 1
      %p85 = por %p83, %p84
      %p87 = scmp.ne.s32.totalorder %s72, %s86
      %p88 = scmp.eq.s32.totalorder %s20, 0
      %p89 = por %p87, %p88
      %p90 = scmp.le.s32.totalorder 1, %s14
      %p91 = scmp.lt.s32.totalorder %s14, 3
      %p92 = pnand %p90, %p91
      %p93 = pneg %p92
      // Predicated region
      $region9: #{tpu_custom_call.1} parent=5 // pred_check
        _
      $region10: #{tpu_custom_call.1} parent=5 // pred_check_branch
        %95 = sbr.rel (%p92) target = $region12
      $region11: #{tpu_custom_call.1} parent=5 // pred_region
        %s96 = ssub.s32 %s14, 1
      $region12: #{tpu_custom_call.1} parent=5 // pred_fallthru
        _
      %p97 = scmp.lt.s32.totalorder %s14, 2
      // Predicated region
      $region13: #{tpu_custom_call.1} parent=5 // pred_check
        %p98 = pneg %p97
      $region14: #{tpu_custom_call.1} parent=5 // pred_check_branch
        %100 = sbr.rel (%p98) target = $region16
      $region15: #{tpu_custom_call.1} parent=5 // pred_region
        // Predicated region
        $region17: #{tpu_custom_call.1} parent=15 // pred_check
          %p101 = pneg %p34
        $region18: #{tpu_custom_call.1} parent=15 // pred_check_branch
          %103 = sbr.rel (%p101) target = $region20
        $region19: #{tpu_custom_call.1} parent=15 // pred_region
          %s104 = sand.u32 %s24, 1
          %s105 = scalar_lea.sflag [#allocation6], %s104
          %s106 = sand.u32 %s24, 1
          %s107 = smul.addr %s106, 256
          %s108 = scalar_lea.vmem [#allocation5], %s107
          %s109 = smul.u32 32, %s14
          %s111 = ssub.s32 4096, 4096
          %112 = vsyncadd %s105, %s111
          %s113 = smul.addr %s109, 128
          %s114 = scalar_lea.hbm %s0, %s113
          %s115 = sshll.u32 %s108, 4
          %s116 = int_to_ptr.vmem [resolvable:$true] %s115
          %121 = dma.hbm_to_vmem [thread:$0]  %s114, 4096, %s116, %s105, 128, 128, 8
        $region20: #{tpu_custom_call.1} parent=15 // pred_fallthru
          _
      $region16: #{tpu_custom_call.1} parent=5 // pred_fallthru
        _
      %p122 = scmp.le.s32.totalorder 1, %s14
      %p123 = scmp.lt.s32.totalorder %s14, 3
      %p124 = pnand %p122, %p123
      %p125 = pneg %p124
      // Predicated region
      $region21: #{tpu_custom_call.1} parent=5 // pred_check
        _
      $region22: #{tpu_custom_call.1} parent=5 // pred_check_branch
        %127 = sbr.rel (%p124) target = $region24
      $region23: #{tpu_custom_call.1} parent=5 // pred_region
        %s128 = ssub.s32 %s14, 1
        %s129 = sand.u32 %s27, 1
        %s130 = scalar_lea.sflag [#allocation6], %s129
        %s131 = sand.u32 %s27, 1
        %s132 = smul.addr %s131, 256
        %s133 = scalar_lea.vmem [#allocation5], %s132
        // Predicated region
        $region25: #{tpu_custom_call.1} parent=23 // pred_check
          %p134 = pneg %p40
        $region26: #{tpu_custom_call.1} parent=23 // pred_check_branch
          %136 = sbr.rel (%p134) target = $region28
        $region27: #{tpu_custom_call.1} parent=23 // pred_region
          %137 = dma.done %s130, 4096
        $region28: #{tpu_custom_call.1} parent=23 // pred_fallthru
          _
        %s138 = sand.u32 %s27, 1
        %s139 = scalar_lea.sflag [#allocation6], %s138
        %s140 = sand.u32 %s27, 1
        %s141 = smul.addr %s140, 256
        %s142 = scalar_lea.vmem [#allocation5], %s141
        %p143 = pneg %p40
        %p144 = pneg %p37
        %p145 = pneg %p61
        %p146 = pneg %p58
        %p147 = pneg %p82
        %p148 = pneg %p79
        %s149 = smul.u32 32, %s19
        %v150 = vld [vmem:[%s133] sm:$0xff]
        %v151 = vld [vmem:[%s133 + $0x8] sm:$0xff]
        %v152 = vld [vmem:[%s133 + $0x10] sm:$0xff]
        %v153 = vld [vmem:[%s133 + $0x18] sm:$0xff]
        %v154 = vld [vmem:[%s133 + $0x20] sm:$0xff]
        %v155 = vld [vmem:[%s133 + $0x28] sm:$0xff]
        %v156 = vld [vmem:[%s133 + $0x30] sm:$0xff]
        %v157 = vld [vmem:[%s133 + $0x38] sm:$0xff]
        %v158 = vld [vmem:[%s133 + $0x40] sm:$0xff]
        %v159 = vld [vmem:[%s133 + $0x48] sm:$0xff]
        %v160 = vld [vmem:[%s133 + $0x50] sm:$0xff]
        %v161 = vld [vmem:[%s133 + $0x58] sm:$0xff]
        %v162 = vld [vmem:[%s133 + $0x60] sm:$0xff]
        %v163 = vld [vmem:[%s133 + $0x68] sm:$0xff]
        %v164 = vld [vmem:[%s133 + $0x70] sm:$0xff]
        %v165 = vld [vmem:[%s133 + $0x78] sm:$0xff]
        %v166 = vld [vmem:[%s133 + $0x80] sm:$0xff]
        %v167 = vld [vmem:[%s133 + $0x88] sm:$0xff]
        %v168 = vld [vmem:[%s133 + $0x90] sm:$0xff]
        %v169 = vld [vmem:[%s133 + $0x98] sm:$0xff]
        %v170 = vld [vmem:[%s133 + $0xa0] sm:$0xff]
        %v171 = vld [vmem:[%s133 + $0xa8] sm:$0xff]
        %v172 = vld [vmem:[%s133 + $0xb0] sm:$0xff]
        %v173 = vld [vmem:[%s133 + $0xb8] sm:$0xff]
        %v174 = vld [vmem:[%s133 + $0xc0] sm:$0xff]
        %v175 = vld [vmem:[%s133 + $0xc8] sm:$0xff]
        %v176 = vld [vmem:[%s133 + $0xd0] sm:$0xff]
        %v177 = vld [vmem:[%s133 + $0xd8] sm:$0xff]
        %v178 = vld [vmem:[%s133 + $0xe0] sm:$0xff]
        %v179 = vld [vmem:[%s133 + $0xe8] sm:$0xff]
        %v180 = vld [vmem:[%s133 + $0xf0] sm:$0xff]
        %v181 = vld [vmem:[%s133 + $0xf8] sm:$0xff]
        %p182 = scmp.eq.s32.totalorder %s19, 0
        // Predicated region
        $region29: #{tpu_custom_call.1} parent=23 // pred_check
          %p183 = pneg %p182
        $region30: #{tpu_custom_call.1} parent=23 // pred_check_branch
          %185 = sbr.rel (%p183) target = $region32
        $region31: #{tpu_custom_call.1} parent=23 // pred_region
          %vm186 = vcmask 261120
          %v187 = vsel %vm186, %v150, 0.0
          %v188 = vsel %vm186, %v151, 0.0
          %v189 = vadd.f32 %v187, %v188
          %v190 = vsel %vm186, %v152, 0.0
          %v191 = vadd.f32 %v189, %v190
          %v192 = vsel %vm186, %v153, 0.0
          %v193 = vadd.f32 %v191, %v192
          %v194 = vsel %vm186, %v154, 0.0
          %v195 = vadd.f32 %v193, %v194
          %v196 = vsel %vm186, %v155, 0.0
          %v197 = vadd.f32 %v195, %v196
          %v198 = vsel %vm186, %v156, 0.0
          %v199 = vadd.f32 %v197, %v198
          %v200 = vsel %vm186, %v157, 0.0
          %v201 = vadd.f32 %v199, %v200
          %v202 = vsel %vm186, %v158, 0.0
          %v203 = vadd.f32 %v201, %v202
          %v204 = vsel %vm186, %v159, 0.0
          %v205 = vadd.f32 %v203, %v204
          %v206 = vsel %vm186, %v160, 0.0
          %v207 = vadd.f32 %v205, %v206
          %v208 = vsel %vm186, %v161, 0.0
          %v209 = vadd.f32 %v207, %v208
          %v210 = vsel %vm186, %v162, 0.0
          %v211 = vadd.f32 %v209, %v210
          %v212 = vsel %vm186, %v163, 0.0
          %v213 = vadd.f32 %v211, %v212
          %v214 = vsel %vm186, %v164, 0.0
          %v215 = vadd.f32 %v213, %v214
          %v216 = vsel %vm186, %v165, 0.0
          %v217 = vadd.f32 %v215, %v216
          %v218 = vsel %vm186, %v166, 0.0
          %v219 = vadd.f32 %v217, %v218
          %v220 = vsel %vm186, %v167, 0.0
          %v221 = vadd.f32 %v219, %v220
          %v222 = vsel %vm186, %v168, 0.0
          %v223 = vadd.f32 %v221, %v222
          %v224 = vsel %vm186, %v169, 0.0
          %v225 = vadd.f32 %v223, %v224
          %v226 = vsel %vm186, %v170, 0.0
          %v227 = vadd.f32 %v225, %v226
          %v228 = vsel %vm186, %v171, 0.0
          %v229 = vadd.f32 %v227, %v228
          %v230 = vsel %vm186, %v172, 0.0
          %v231 = vadd.f32 %v229, %v230
          %v232 = vsel %vm186, %v173, 0.0
          %v233 = vadd.f32 %v231, %v232
          %v234 = vsel %vm186, %v174, 0.0
          %v235 = vadd.f32 %v233, %v234
          %v236 = vsel %vm186, %v175, 0.0
          %v237 = vadd.f32 %v235, %v236
          %v238 = vsel %vm186, %v176, 0.0
          %v239 = vadd.f32 %v237, %v238
          %v240 = vsel %vm186, %v177, 0.0
          %v241 = vadd.f32 %v239, %v240
          %v242 = vsel %vm186, %v178, 0.0
          %v243 = vadd.f32 %v241, %v242
          %v244 = vsel %vm186, %v179, 0.0
          %v245 = vadd.f32 %v243, %v244
          %v246 = vsel %vm186, %v180, 0.0
          %v247 = vadd.f32 %v245, %v246
          %v248 = vsel %vm186, %v181, 0.0
          %v249 = vadd.f32 %v247, %v248
          %v250 = vrot.slane %v249, 4
          %v251 = vadd.f32 %v249, %v250
          %v252 = vrot.slane %v251, 2
          %v253 = vadd.f32 %v251, %v252
          %v254 = vrot.slane %v253, 1
          %v255 = vadd.f32 %v253, %v254
          %v256 = vrcp.pop 256.0
          %v257 = vmul.f32 %v255, %v256
          %vm258 = vcmask 253952
          %259 = vst.msk [vmem:[#allocation2] sm:$0x1] %vm258, %v257
          %260 = vst.msk [vmem:[#allocation3] sm:$0xff] %vm186, 0.0
          %261 = vst.msk [vmem:[#allocation4] sm:$0xff] %vm186, 0.0
        $region32: #{tpu_custom_call.1} parent=23 // pred_fallthru
          _
        %v262 = vlaneseq
        %v263 = vshrl.u32 %v262, 7
        %v264 = vadd.s32 %v263, 8
        %v265 = vadd.s32 %v263, 16
        %v266 = vadd.s32 %v263, 24
        %v267 = vadd.s32 %v263, 32
        %v268 = vadd.s32 %v263, 40
        %v269 = vadd.s32 %v263, 48
        %v270 = vadd.s32 %v263, 56
        %v271 = vadd.s32 %v263, 64
        %v272 = vadd.s32 %v263, 72
        %v273 = vadd.s32 %v263, 80
        %v274 = vadd.s32 %v263, 88
        %v275 = vadd.s32 %v263, 96
        %v276 = vadd.s32 %v263, 104
        %v277 = vadd.s32 %v263, 112
        %v278 = vadd.s32 %v263, 120
        %v279 = vadd.s32 %v263, 128
        %v280 = vadd.s32 %v263, 136
        %v281 = vadd.s32 %v263, 144
        %v282 = vadd.s32 %v263, 152
        %v283 = vadd.s32 %v263, 160
        %v284 = vadd.s32 %v263, 168
        %v285 = vadd.s32 %v263, 176
        %v286 = vadd.s32 %v263, 184
        %v287 = vadd.s32 %v263, 192
        %v288 = vadd.s32 %v263, 200
        %v289 = vadd.s32 %v263, 208
        %v290 = vadd.s32 %v263, 216
        %v291 = vadd.s32 %v263, 224
        %v292 = vadd.s32 %v263, 232
        %v293 = vadd.s32 %v263, 240
        %v294 = vadd.s32 %v263, 248
        %s295 = smul.u32 %s19, 256
        %s296 = ssub.s32 384, %s295
        %v297 = vstv %s296
        %vm298 = vcmp.lt.s32.totalorder %v263, %v297
        %vm299 = vcmp.lt.s32.totalorder %v264, %v297
        %vm300 = vcmp.lt.s32.totalorder %v265, %v297
        %vm301 = vcmp.lt.s32.totalorder %v266, %v297
        %vm302 = vcmp.lt.s32.totalorder %v267, %v297
        %vm303 = vcmp.lt.s32.totalorder %v268, %v297
        %vm304 = vcmp.lt.s32.totalorder %v269, %v297
        %vm305 = vcmp.lt.s32.totalorder %v270, %v297
        %vm306 = vcmp.lt.s32.totalorder %v271, %v297
        %vm307 = vcmp.lt.s32.totalorder %v272, %v297
        %vm308 = vcmp.lt.s32.totalorder %v273, %v297
        %vm309 = vcmp.lt.s32.totalorder %v274, %v297
        %vm310 = vcmp.lt.s32.totalorder %v275, %v297
        %vm311 = vcmp.lt.s32.totalorder %v276, %v297
        %vm312 = vcmp.lt.s32.totalorder %v277, %v297
        %vm313 = vcmp.lt.s32.totalorder %v278, %v297
        %vm314 = vcmp.lt.s32.totalorder %v279, %v297
        %vm315 = vcmp.lt.s32.totalorder %v280, %v297
        %vm316 = vcmp.lt.s32.totalorder %v281, %v297
        %vm317 = vcmp.lt.s32.totalorder %v282, %v297
        %vm318 = vcmp.lt.s32.totalorder %v283, %v297
        %vm319 = vcmp.lt.s32.totalorder %v284, %v297
        %vm320 = vcmp.lt.s32.totalorder %v285, %v297
        %vm321 = vcmp.lt.s32.totalorder %v286, %v297
        %vm322 = vcmp.lt.s32.totalorder %v287, %v297
        %vm323 = vcmp.lt.s32.totalorder %v288, %v297
        %vm324 = vcmp.lt.s32.totalorder %v289, %v297
        %vm325 = vcmp.lt.s32.totalorder %v290, %v297
        %vm326 = vcmp.lt.s32.totalorder %v291, %v297
        %vm327 = vcmp.lt.s32.totalorder %v292, %v297
        %vm328 = vcmp.lt.s32.totalorder %v293, %v297
        %vm329 = vcmp.lt.s32.totalorder %v294, %v297
        %v330 = vld [vmem:[#allocation2] sm:$0x1]
        %v332 = vlaneseq
        %v333 = vshrl.u32 %v332, 7
        %v334 = vsub.s32 0, %v333
        %v335 = vrot.slane %v330, %v334
        %v337 = vsub.f32 %v150, %v335
        %v338 = vsub.f32 %v151, %v335
        %v339 = vsub.f32 %v152, %v335
        %v340 = vsub.f32 %v153, %v335
        %v341 = vsub.f32 %v154, %v335
        %v342 = vsub.f32 %v155, %v335
        %v343 = vsub.f32 %v156, %v335
        %v344 = vsub.f32 %v157, %v335
        %v345 = vsub.f32 %v158, %v335
        %v346 = vsub.f32 %v159, %v335
        %v347 = vsub.f32 %v160, %v335
        %v348 = vsub.f32 %v161, %v335
        %v349 = vsub.f32 %v162, %v335
        %v350 = vsub.f32 %v163, %v335
        %v351 = vsub.f32 %v164, %v335
        %v352 = vsub.f32 %v165, %v335
        %v353 = vsub.f32 %v166, %v335
        %v354 = vsub.f32 %v167, %v335
        %v355 = vsub.f32 %v168, %v335
        %v356 = vsub.f32 %v169, %v335
        %v357 = vsub.f32 %v170, %v335
        %v358 = vsub.f32 %v171, %v335
        %v359 = vsub.f32 %v172, %v335
        %v360 = vsub.f32 %v173, %v335
        %v361 = vsub.f32 %v174, %v335
        %v362 = vsub.f32 %v175, %v335
        %v363 = vsub.f32 %v176, %v335
        %v364 = vsub.f32 %v177, %v335
        %v365 = vsub.f32 %v178, %v335
        %v366 = vsub.f32 %v179, %v335
        %v367 = vsub.f32 %v180, %v335
        %v368 = vsub.f32 %v181, %v335
        %v369 = vsel %vm298, %v337, 0.0
        %v370 = vsel %vm299, %v338, 0.0
        %v371 = vsel %vm300, %v339, 0.0
        %v372 = vsel %vm301, %v340, 0.0
        %v373 = vsel %vm302, %v341, 0.0
        %v374 = vsel %vm303, %v342, 0.0
        %v375 = vsel %vm304, %v343, 0.0
        %v376 = vsel %vm305, %v344, 0.0
        %v377 = vsel %vm306, %v345, 0.0
        %v378 = vsel %vm307, %v346, 0.0
        %v379 = vsel %vm308, %v347, 0.0
        %v380 = vsel %vm309, %v348, 0.0
        %v381 = vsel %vm310, %v349, 0.0
        %v382 = vsel %vm311, %v350, 0.0
        %v383 = vsel %vm312, %v351, 0.0
        %v384 = vsel %vm313, %v352, 0.0
        %v385 = vsel %vm314, %v353, 0.0
        %v386 = vsel %vm315, %v354, 0.0
        %v387 = vsel %vm316, %v355, 0.0
        %v388 = vsel %vm317, %v356, 0.0
        %v389 = vsel %vm318, %v357, 0.0
        %v390 = vsel %vm319, %v358, 0.0
        %v391 = vsel %vm320, %v359, 0.0
        %v392 = vsel %vm321, %v360, 0.0
        %v393 = vsel %vm322, %v361, 0.0
        %v394 = vsel %vm323, %v362, 0.0
        %v395 = vsel %vm324, %v363, 0.0
        %v396 = vsel %vm325, %v364, 0.0
        %v397 = vsel %vm326, %v365, 0.0
        %v398 = vsel %vm327, %v366, 0.0
        %v399 = vsel %vm328, %v367, 0.0
        %v400 = vsel %vm329, %v368, 0.0
        %v401 = vld [vmem:[#allocation3] sm:$0xff]
        %vm402 = vcmask 261120
        %v403 = vsel %vm402, %v369, 0.0
        %v404 = vsel %vm402, %v370, 0.0
        %v405 = vadd.f32 %v403, %v404
        %v406 = vsel %vm402, %v371, 0.0
        %v407 = vadd.f32 %v405, %v406
        %v408 = vsel %vm402, %v372, 0.0
        %v409 = vadd.f32 %v407, %v408
        %v410 = vsel %vm402, %v373, 0.0
        %v411 = vadd.f32 %v409, %v410
        %v412 = vsel %vm402, %v374, 0.0
        %v413 = vadd.f32 %v411, %v412
        %v414 = vsel %vm402, %v375, 0.0
        %v415 = vadd.f32 %v413, %v414
        %v416 = vsel %vm402, %v376, 0.0
        %v417 = vadd.f32 %v415, %v416
        %v418 = vsel %vm402, %v377, 0.0
        %v419 = vadd.f32 %v417, %v418
        %v420 = vsel %vm402, %v378, 0.0
        %v421 = vadd.f32 %v419, %v420
        %v422 = vsel %vm402, %v379, 0.0
        %v423 = vadd.f32 %v421, %v422
        %v424 = vsel %vm402, %v380, 0.0
        %v425 = vadd.f32 %v423, %v424
        %v426 = vsel %vm402, %v381, 0.0
        %v427 = vadd.f32 %v425, %v426
        %v428 = vsel %vm402, %v382, 0.0
        %v429 = vadd.f32 %v427, %v428
        %v430 = vsel %vm402, %v383, 0.0
        %v431 = vadd.f32 %v429, %v430
        %v432 = vsel %vm402, %v384, 0.0
        %v433 = vadd.f32 %v431, %v432
        %v434 = vsel %vm402, %v385, 0.0
        %v435 = vadd.f32 %v433, %v434
        %v436 = vsel %vm402, %v386, 0.0
        %v437 = vadd.f32 %v435, %v436
        %v438 = vsel %vm402, %v387, 0.0
        %v439 = vadd.f32 %v437, %v438
        %v440 = vsel %vm402, %v388, 0.0
        %v441 = vadd.f32 %v439, %v440
        %v442 = vsel %vm402, %v389, 0.0
        %v443 = vadd.f32 %v441, %v442
        %v444 = vsel %vm402, %v390, 0.0
        %v445 = vadd.f32 %v443, %v444
        %v446 = vsel %vm402, %v391, 0.0
        %v447 = vadd.f32 %v445, %v446
        %v448 = vsel %vm402, %v392, 0.0
        %v449 = vadd.f32 %v447, %v448
        %v450 = vsel %vm402, %v393, 0.0
        %v451 = vadd.f32 %v449, %v450
        %v452 = vsel %vm402, %v394, 0.0
        %v453 = vadd.f32 %v451, %v452
        %v454 = vsel %vm402, %v395, 0.0
        %v455 = vadd.f32 %v453, %v454
        %v456 = vsel %vm402, %v396, 0.0
        %v457 = vadd.f32 %v455, %v456
        %v458 = vsel %vm402, %v397, 0.0
        %v459 = vadd.f32 %v457, %v458
        %v460 = vsel %vm402, %v398, 0.0
        %v461 = vadd.f32 %v459, %v460
        %v462 = vsel %vm402, %v399, 0.0
        %v463 = vadd.f32 %v461, %v462
        %v464 = vsel %vm402, %v400, 0.0
        %v465 = vadd.f32 %v463, %v464
        %v466 = vadd.f32 %v401, %v465
        %467 = vst.msk [vmem:[#allocation3] sm:$0xff] %vm402, %v466
        %v468 = vld [vmem:[#allocation4] sm:$0xff]
        %v469 = vmul.f32 %v369, %v369
        %v470 = vmul.f32 %v370, %v370
        %v471 = vmul.f32 %v371, %v371
        %v472 = vmul.f32 %v372, %v372
        %v473 = vmul.f32 %v373, %v373
        %v474 = vmul.f32 %v374, %v374
        %v475 = vmul.f32 %v375, %v375
        %v476 = vmul.f32 %v376, %v376
        %v477 = vmul.f32 %v377, %v377
        %v478 = vmul.f32 %v378, %v378
        %v479 = vmul.f32 %v379, %v379
        %v480 = vmul.f32 %v380, %v380
        %v481 = vmul.f32 %v381, %v381
        %v482 = vmul.f32 %v382, %v382
        %v483 = vmul.f32 %v383, %v383
        %v484 = vmul.f32 %v384, %v384
        %v485 = vmul.f32 %v385, %v385
        %v486 = vmul.f32 %v386, %v386
        %v487 = vmul.f32 %v387, %v387
        %v488 = vmul.f32 %v388, %v388
        %v489 = vmul.f32 %v389, %v389
        %v490 = vmul.f32 %v390, %v390
        %v491 = vmul.f32 %v391, %v391
        %v492 = vmul.f32 %v392, %v392
        %v493 = vmul.f32 %v393, %v393
        %v494 = vmul.f32 %v394, %v394
        %v495 = vmul.f32 %v395, %v395
        %v496 = vmul.f32 %v396, %v396
        %v497 = vmul.f32 %v397, %v397
        %v498 = vmul.f32 %v398, %v398
        %v499 = vmul.f32 %v399, %v399
        %v500 = vmul.f32 %v400, %v400
        %v501 = vsel %vm402, %v469, 0.0
        %v502 = vsel %vm402, %v470, 0.0
        %v503 = vadd.f32 %v501, %v502
        %v504 = vsel %vm402, %v471, 0.0
        %v505 = vadd.f32 %v503, %v504
        %v506 = vsel %vm402, %v472, 0.0
        %v507 = vadd.f32 %v505, %v506
        %v508 = vsel %vm402, %v473, 0.0
        %v509 = vadd.f32 %v507, %v508
        %v510 = vsel %vm402, %v474, 0.0
        %v511 = vadd.f32 %v509, %v510
        %v512 = vsel %vm402, %v475, 0.0
        %v513 = vadd.f32 %v511, %v512
        %v514 = vsel %vm402, %v476, 0.0
        %v515 = vadd.f32 %v513, %v514
        %v516 = vsel %vm402, %v477, 0.0
        %v517 = vadd.f32 %v515, %v516
        %v518 = vsel %vm402, %v478, 0.0
        %v519 = vadd.f32 %v517, %v518
        %v520 = vsel %vm402, %v479, 0.0
        %v521 = vadd.f32 %v519, %v520
        %v522 = vsel %vm402, %v480, 0.0
        %v523 = vadd.f32 %v521, %v522
        %v524 = vsel %vm402, %v481, 0.0
        %v525 = vadd.f32 %v523, %v524
        %v526 = vsel %vm402, %v482, 0.0
        %v527 = vadd.f32 %v525, %v526
        %v528 = vsel %vm402, %v483, 0.0
        %v529 = vadd.f32 %v527, %v528
        %v530 = vsel %vm402, %v484, 0.0
        %v531 = vadd.f32 %v529, %v530
        %v532 = vsel %vm402, %v485, 0.0
        %v533 = vadd.f32 %v531, %v532
        %v534 = vsel %vm402, %v486, 0.0
        %v535 = vadd.f32 %v533, %v534
        %v536 = vsel %vm402, %v487, 0.0
        %v537 = vadd.f32 %v535, %v536
        %v538 = vsel %vm402, %v488, 0.0
        %v539 = vadd.f32 %v537, %v538
        %v540 = vsel %vm402, %v489, 0.0
        %v541 = vadd.f32 %v539, %v540
        %v542 = vsel %vm402, %v490, 0.0
        %v543 = vadd.f32 %v541, %v542
        %v544 = vsel %vm402, %v491, 0.0
        %v545 = vadd.f32 %v543, %v544
        %v546 = vsel %vm402, %v492, 0.0
        %v547 = vadd.f32 %v545, %v546
        %v548 = vsel %vm402, %v493, 0.0
        %v549 = vadd.f32 %v547, %v548
        %v550 = vsel %vm402, %v494, 0.0
        %v551 = vadd.f32 %v549, %v550
        %v552 = vsel %vm402, %v495, 0.0
        %v553 = vadd.f32 %v551, %v552
        %v554 = vsel %vm402, %v496, 0.0
        %v555 = vadd.f32 %v553, %v554
        %v556 = vsel %vm402, %v497, 0.0
        %v557 = vadd.f32 %v555, %v556
        %v558 = vsel %vm402, %v498, 0.0
        %v559 = vadd.f32 %v557, %v558
        %v560 = vsel %vm402, %v499, 0.0
        %v561 = vadd.f32 %v559, %v560
        %v562 = vsel %vm402, %v500, 0.0
        %v563 = vadd.f32 %v561, %v562
        %v564 = vadd.f32 %v468, %v563
        %565 = vst.msk [vmem:[#allocation4] sm:$0xff] %vm402, %v564
        %p566 = scmp.eq.s32.totalorder %s19, 1
        // Predicated region
        $region33: #{tpu_custom_call.1} parent=23 // pred_check
          %p567 = pneg %p566
        $region34: #{tpu_custom_call.1} parent=23 // pred_check_branch
          %569 = sbr.rel (%p567) target = $region36
        $region35: #{tpu_custom_call.1} parent=23 // pred_region
          %v570 = vld [vmem:[#allocation3] sm:$0xff]
          %v571 = vsel %vm402, %v570, 0.0
          %v572 = vrot.slane %v571, 4
          %v573 = vadd.f32 %v571, %v572
          %v574 = vrot.slane %v573, 2
          %v575 = vadd.f32 %v573, %v574
          %v576 = vrot.slane %v575, 1
          %v577 = vadd.f32 %v575, %v576
          %v578 = vmul.f32 %v577, 0.0026041667
          %v579 = vld [vmem:[#allocation4] sm:$0xff]
          %v580 = vsel %vm402, %v579, 0.0
          %v581 = vrot.slane %v580, 4
          %v582 = vadd.f32 %v580, %v581
          %v583 = vrot.slane %v582, 2
          %v584 = vadd.f32 %v582, %v583
          %v585 = vrot.slane %v584, 1
          %v586 = vadd.f32 %v584, %v585
          %v587 = vmul.f32 %v586, 0.0026041667
          %v588 = vld [vmem:[#allocation2] sm:$0x1]
          %v589 = vadd.f32 %v588, %v578
          %vm590 = vcmask 253952
          %591 = vst.msk [vmem:[#allocation8] sm:$0x1] %vm590, %v589
          %v592 = vmul.f32 %v578, %v578
          %v593 = vsub.f32 %v587, %v592
          %594 = vst.msk [vmem:[#allocation9] sm:$0x1] %vm590, %v593
        $region36: #{tpu_custom_call.1} parent=23 // pred_fallthru
          _
        // Predicated region
        $region37: #{tpu_custom_call.1} parent=23 // pred_check
          %p595 = pneg %p58
        $region38: #{tpu_custom_call.1} parent=23 // pred_check_branch
          %597 = sbr.rel (%p595) target = $region40
        $region39: #{tpu_custom_call.1} parent=23 // pred_region
          %s599 = ssub.s32 16, 16
          %600 = vsyncadd [#allocation7], %s599
          %s602 = sshll.u32 [#allocation8], 4
          %s603 = int_to_ptr.vmem [resolvable:$true] %s602
          %605 = dma.vmem_to_hbm [thread:$0]  %s603, 16, %s1, [#allocation7]
        $region40: #{tpu_custom_call.1} parent=23 // pred_fallthru
          _
        // Predicated region
        $region41: #{tpu_custom_call.1} parent=23 // pred_check
          %p606 = pneg %p79
        $region42: #{tpu_custom_call.1} parent=23 // pred_check_branch
          %608 = sbr.rel (%p606) target = $region44
        $region43: #{tpu_custom_call.1} parent=23 // pred_region
          %s610 = ssub.s32 16, 16
          %611 = vsyncadd [#allocation10], %s610
          %s613 = sshll.u32 [#allocation9], 4
          %s614 = int_to_ptr.vmem [resolvable:$true] %s613
          %616 = dma.vmem_to_hbm [thread:$0]  %s614, 16, %s2, [#allocation10]
        $region44: #{tpu_custom_call.1} parent=23 // pred_fallthru
          _
        // Predicated region
        $region45: #{tpu_custom_call.1} parent=23 // pred_check
          %p617 = pneg %p58
        $region46: #{tpu_custom_call.1} parent=23 // pred_check_branch
          %619 = sbr.rel (%p617) target = $region48
        $region47: #{tpu_custom_call.1} parent=23 // pred_region
          %620 = dma.done [#allocation7], 16
        $region48: #{tpu_custom_call.1} parent=23 // pred_fallthru
          _
        // Predicated region
        $region49: #{tpu_custom_call.1} parent=23 // pred_check
          %p621 = pneg %p79
        $region50: #{tpu_custom_call.1} parent=23 // pred_check_branch
          %623 = sbr.rel (%p621) target = $region52
        $region51: #{tpu_custom_call.1} parent=23 // pred_region
          %624 = dma.done [#allocation10], 16
        $region52: #{tpu_custom_call.1} parent=23 // pred_fallthru
          _
      $region24: #{tpu_custom_call.1} parent=5 // pred_fallthru
        _
      %p625 = scmp.le.s32.totalorder 2, %s14
      // Predicated region
      $region53: #{tpu_custom_call.1} parent=5 // pred_check
        %p626 = pneg %p625
      $region54: #{tpu_custom_call.1} parent=5 // pred_check_branch
        %628 = sbr.rel (%p626) target = $region56
      $region55: #{tpu_custom_call.1} parent=5 // pred_region
        %s629 = ssub.s32 %s14, 2
      $region56: #{tpu_custom_call.1} parent=5 // pred_fallthru
        _
    $region6: #{tpu_custom_call.1} parent=1 // loop_footer
      %s18 = sadd.s32 1, %s14
    $region7: #{tpu_custom_call.1} parent=1 // loop_footer_branch
      %13 = sbr.rel target = $region3
    $region8: #{tpu_custom_call.1} parent=1 // loop_exit
      _
    %630 = vsyncpa [#allocation6], 1
    %s631 = scalar_lea.sflag [#allocation6], 1
    %632 = vsyncpa %s631, 1
    %633 = vsyncpa [#allocation7], 1
    %s634 = scalar_lea.sflag [#allocation7], 1
    %635 = vsyncpa %s634, 1
    %636 = vsyncpa [#allocation10], 1

</llo_original>
